<compile_context>
chip_gen: v7x
topology: tpu7x:2x2x1
jax: 0.10.0
libtpu: 0.0.40
codegen_flags: <defaults>
</compile_context>

<pallas_src>
import functools

import jax
import jax.numpy as jnp
from jax import lax
from jax.experimental import pallas as pl
from jax.experimental.pallas import tpu as pltpu

EPS = 1e-5  # PyTorch InstanceNorm2d default (affine=False, no running stats)


def _instance_norm(y):
    """Per-channel normalization over the spatial (lane) axis.

    Two-pass variance mean((y - mean)^2): the centered values are needed for
    the output anyway, and the variance cannot go negative, so
    rsqrt(var + EPS) is always finite.
    """
    mean = jnp.mean(y, axis=1, keepdims=True)
    c = y - mean
    var = jnp.mean(c * c, axis=1, keepdims=True)
    return c * lax.rsqrt(var + EPS)


def _conv3x3_fused(v, w_ref, taps_ref, width, masks):
    """3x3 conv with reflection padding 1 as ONE deep-K matmul.

    v:        (C_in, N) tile, N = H*W, model/compute dtype.
    w_ref:    (C_out, 9*C_in) VMEM ref; column block k*C_in:(k+1)*C_in holds
              tap k = dh*3 + dw.
    taps_ref: (9*C_in, N) VMEM scratch slab; tap k is stored at rows k*C_in:.
    masks:    (w==0, w==W-1, h==0, h==H-1) booleans already broadcast to (C,N).

    Tap inputs are circular lane rolls of the flat spatial axis (exact in the
    interior) plus jnp.where fix-ups at the image border, which is exactly
    reflection padding — no padded tensors or patch copies.  Rolls use the XLU
    slot; the single matmul keeps the MXU fed with K = 9*C.
    """
    first_col, last_col, first_row, last_row = masks
    c, n = v.shape

    vm = pltpu.roll(v, 1, axis=1)          # v[:, i-1]
    vp = pltpu.roll(v, n - 1, axis=1)      # v[:, i+1]
    cols = (
        jnp.where(first_col, vp, vm),      # dw=0: column w-1, reflected
        v,                                 # dw=1: column w
        jnp.where(last_col, vm, vp),       # dw=2: column w+1, reflected
    )
    for dw, cv in enumerate(cols):
        rm = pltpu.roll(cv, width, axis=1)      # cv[:, i-W]  (row h-1)
        rp = pltpu.roll(cv, n - width, axis=1)  # cv[:, i+W]  (row h+1)
        rows = (
            jnp.where(first_row, rp, rm),       # dh=0: row h-1, reflected
            cv,                                 # dh=1: row h
            jnp.where(last_row, rm, rp),        # dh=2: row h+1, reflected
        )
        for dh, tap in enumerate(rows):
            k = dh * 3 + dw
            taps_ref[pl.ds(k * c, c), :] = tap  # static sublane slice store

    # Single K = 9*C matmul on the MXU, f32 accumulation.
    return jnp.dot(w_ref[...], taps_ref[...],
                   preferred_element_type=jnp.float32)   # (C_out, N) f32


def _residual_block_kernel(col_ref, x_ref, w1_ref, w2_ref, o_ref, taps_ref, *,
                           width):
    _, C, n = x_ref.shape

    # Reflection-boundary masks, built once per image and broadcast to (C, N)
    # once (hoists ~12 redundant broadcast_in_dim out of the 16 jnp.where's).
    col = col_ref[...]                                   # (1, N) column index
    idx = lax.broadcasted_iota(jnp.int32, (1, n), 1)     # flat spatial index
    masks = (
        jnp.broadcast_to(col == 0, (C, n)),          # w == 0
        jnp.broadcast_to(col == width - 1, (C, n)),  # w == W-1
        jnp.broadcast_to(idx < width, (C, n)),       # h == 0
        jnp.broadcast_to(idx >= n - width, (C, n)),  # h == H-1
    )

    # conv -> IN -> ReLU -> conv -> IN   (conv bias is a no-op under IN)
    x = x_ref[0]                                                   # (C, N)
    y = _instance_norm(_conv3x3_fused(x, w1_ref, taps_ref, width, masks))
    y = jnp.maximum(y, 0.0)
    z = _instance_norm(
        _conv3x3_fused(y.astype(x_ref.dtype), w2_ref, taps_ref, width, masks))

    # Residual add: re-read x from VMEM instead of holding it live above.
    o_ref[0] = (x_ref[0].astype(jnp.float32) + z).astype(o_ref.dtype)


def residual_block(x_nchw, w1, b1, w2, b2):
    """x_nchw: (B, C, H, W).  w*: (C, C, 3, 3) PyTorch OIHW.  b*: (C,).

    b1/b2 are accepted for interface parity but unused: adding a per-channel
    constant before InstanceNorm2d (affine=False, track_running_stats=False —
    the PyTorch defaults this module uses) has no effect on the output.  If
    running stats in eval mode were ever enabled, the bias would have to be
    re-introduced.
    """
    del b1, b2
    B, C, H, W = x_nchw.shape
    if H < 2 or W < 2:
        raise ValueError("ReflectionPad2d(1) requires H >= 2 and W >= 2")
    N = H * W
    dtype = x_nchw.dtype
    itemsize = jnp.dtype(dtype).itemsize

    # NCHW -> (B, C, H*W): free reshape; spatial dim lands on the lane axis.
    # (If N is not a multiple of 128 the kernel stays correct but lane stores
    # become masked; production style-transfer shapes are lane-dense.)
    x_flat = x_nchw.reshape(B, C, N)

    # OIHW -> (C_out, 9*C_in), K-major in tap order k = kh*3 + kw, matching
    # the (9C, N) tap slab built in-kernel.  Done once here so no weight
    # relayout is repeated per grid step; kept in the model dtype for the MXU.
    w1_k = jnp.transpose(w1, (0, 2, 3, 1)).reshape(C, 9 * C).astype(dtype)
    w2_k = jnp.transpose(w2, (0, 2, 3, 1)).reshape(C, 9 * C).astype(dtype)

    # Single int32 row with the column index of each flat spatial position.
    # Row masks come from an in-kernel iota; only the column index needs a
    # modulo, computed once here on the host-side XLA graph.
    col_idx = (jnp.arange(N, dtype=jnp.int32) % W).reshape(1, N)

    cost = pl.CostEstimate(
        flops=2 * 2 * 9 * B * N * C * C,          # two 3x3 convs
        transcendentals=2 * B * C,                # rsqrt per (image, channel)
        bytes_accessed=(2 * B * C * N * itemsize  # x in + out
                        + 2 * 9 * C * C * itemsize
                        + 4 * N),
    )

    # Generation-aware VMEM budget: never ask for the full physical VMEM
    # (v7x has only 64 MiB/core and Mosaic needs headroom for pipeline
    # buffers); 0.8x capacity ~= 51 MiB on v7x, ~102 MiB on v5e/v6e.
    try:
        vmem_cap = int(0.8 * pltpu.get_tpu_info().vmem_capacity_bytes)
    except Exception:  # conservative fallback if the query is unavailable
        vmem_cap = 48 * 1024 * 1024
    working_set = (
        4 * C * N * itemsize          # x/out blocks, double-buffered
        + 4 * 9 * C * C * itemsize    # both fused weights, double-buffered
        + 9 * C * N * itemsize        # tap slab scratch
        + 20 * C * N * 4              # f32 intermediates + headroom
        + 2 * 8 * N * 4)              # padded column-index row
    vmem_limit = int(min(vmem_cap, max(16 * 1024 * 1024, working_set)))

    out = pl.pallas_call(
        functools.partial(_residual_block_kernel, width=W),
        out_shape=jax.ShapeDtypeStruct((B, C, N), dtype),
        grid_spec=pltpu.PrefetchScalarGridSpec(
            num_scalar_prefetch=0,
            grid=(B,),
            in_specs=[
                pl.BlockSpec((1, N), lambda b: (0, 0)),        # column index
                pl.BlockSpec((1, C, N), lambda b: (b, 0, 0)),  # x
                pl.BlockSpec((C, 9 * C), lambda b: (0, 0)),    # w1 fused
                pl.BlockSpec((C, 9 * C), lambda b: (0, 0)),    # w2 fused
            ],
            out_specs=pl.BlockSpec((1, C, N), lambda b: (b, 0, 0)),
            scratch_shapes=[pltpu.VMEM((9 * C, N), dtype)],    # tap slab
        ),
        compiler_params=pltpu.CompilerParams(
            dimension_semantics=("parallel",),
            vmem_limit_bytes=vmem_limit,
        ),
        cost_estimate=cost,
    )(col_idx, x_flat, w1_k, w2_k)

    return out.reshape(B, C, H, W)


# ---------------- pure-JAX reference (for correctness check) ----------------
def _ref_conv_block(x, w1, b1, w2, b2):
    def conv_in(x, w, b):
        xp = jnp.pad(x, ((0, 0), (0, 0), (1, 1), (1, 1)), mode="reflect")
        y = lax.conv_general_dilated(
            xp, w, window_strides=(1, 1), padding="VALID",
            dimension_numbers=("NCHW", "OIHW", "NCHW"))
        y = y + b.reshape(1, -1, 1, 1)
        mean = jnp.mean(y, axis=(2, 3), keepdims=True)
        var = jnp.mean((y - mean) ** 2, axis=(2, 3), keepdims=True)
        return (y - mean) * lax.rsqrt(var + EPS)

    y = jnp.maximum(conv_in(x, w1, b1), 0.0)
    z = conv_in(y, w2, b2)
    return x + z


if __name__ == "__main__":
    B, C, H, W = 2, 4, 16, 16
    key = jax.random.PRNGKey(0)
    kx, kw1, kb1, kw2, kb2 = jax.random.split(key, 5)

    x = jax.random.normal(kx, (B, C, H, W), dtype=jnp.float32)

    # Deterministic conv params (PyTorch-like uniform init bounds).
    fan_in = C * 3 * 3
    bound = 1.0 / jnp.sqrt(fan_in)
    w1 = jax.random.uniform(kw1, (C, C, 3, 3), jnp.float32, -bound, bound)
    b1 = jax.random.uniform(kb1, (C,), jnp.float32, -bound, bound)
    w2 = jax.random.uniform(kw2, (C, C, 3, 3), jnp.float32, -bound, bound)
    b2 = jax.random.uniform(kb2, (C,), jnp.float32, -bound, bound)

    out = residual_block(x, w1, b1, w2, b2)
    out = jax.block_until_ready(out)

    ref = _ref_conv_block(x, w1, b1, w2, b2)
    assert out.shape == (B, C, H, W)
    assert jnp.allclose(out, ref, atol=1e-4, rtol=1e-4), \
        f"max abs err {jnp.max(jnp.abs(out - ref))}"

    print("KERNEL_OK")
</pallas_src>

<mosaic_0001>
module attributes {stable_mosaic.version = 11 : i64} {
  func.func @_residual_block_kernel(%arg0: i32, %arg1: memref<1x256xi32, #tpu.memory_space<vmem>>, %arg2: memref<1x4x256xf32, #tpu.memory_space<vmem>>, %arg3: memref<4x36xf32, #tpu.memory_space<vmem>>, %arg4: memref<4x36xf32, #tpu.memory_space<vmem>>, %arg5: memref<1x4x256xf32, #tpu.memory_space<vmem>>, %arg6: memref<36x256xf32, #tpu.memory_space<vmem>>) attributes {dimension_semantics = [#tpu.dimension_semantics<parallel>], iteration_bounds = array<i64: 2>, scalar_prefetch = 0 : i64, scratch_operands = 1 : i64, tpu.core_type = #tpu.core_type<tc>, window_params = [{pipeline_mode = #tpu.pipeline_mode<synchronous>, transform_indices = @transform_0, window_bounds = array<i64: 1, 256>}, {transform_indices = @transform_1, window_bounds = array<i64: 1, 4, 256>}, {pipeline_mode = #tpu.pipeline_mode<synchronous>, transform_indices = @transform_2, window_bounds = array<i64: 4, 36>}, {pipeline_mode = #tpu.pipeline_mode<synchronous>, transform_indices = @transform_3, window_bounds = array<i64: 4, 36>}, {transform_indices = @transform_4, window_bounds = array<i64: 1, 4, 256>}]} {
    %c0 = arith.constant 0 : index
    %c0_0 = arith.constant 0 : index
    %0 = vector.load %arg1[%c0, %c0_0] : memref<1x256xi32, #tpu.memory_space<vmem>>, vector<1x256xi32>
    %1 = tpu.iota {dimensions = array<i32: 1>} : vector<1x256xi32>
    %c0_i32 = arith.constant 0 : i32
    %2 = vector.broadcast %c0_i32 : i32 to vector<1x256xi32>
    %3 = arith.cmpi eq, %0, %2 : vector<1x256xi32>
    %4 = vector.shape_cast %3 : vector<1x256xi1> to vector<1x256xi1>
    %5 = vector.broadcast %4 : vector<1x256xi1> to vector<4x256xi1>
    %c15_i32 = arith.constant 15 : i32
    %6 = vector.broadcast %c15_i32 : i32 to vector<1x256xi32>
    %7 = arith.cmpi eq, %0, %6 : vector<1x256xi32>
    %8 = vector.shape_cast %7 : vector<1x256xi1> to vector<1x256xi1>
    %9 = vector.broadcast %8 : vector<1x256xi1> to vector<4x256xi1>
    %c16_i32 = arith.constant 16 : i32
    %10 = vector.broadcast %c16_i32 : i32 to vector<1x256xi32>
    %11 = arith.cmpi slt, %1, %10 : vector<1x256xi32>
    %12 = vector.shape_cast %11 : vector<1x256xi1> to vector<1x256xi1>
    %13 = vector.broadcast %12 : vector<1x256xi1> to vector<4x256xi1>
    %c240_i32 = arith.constant 240 : i32
    %14 = vector.broadcast %c240_i32 : i32 to vector<1x256xi32>
    %15 = arith.cmpi sge, %1, %14 : vector<1x256xi32>
    %16 = vector.shape_cast %15 : vector<1x256xi1> to vector<1x256xi1>
    %17 = vector.broadcast %16 : vector<1x256xi1> to vector<4x256xi1>
    %c0_1 = arith.constant 0 : index
    %c0_2 = arith.constant 0 : index
    %c0_3 = arith.constant 0 : index
    %18 = vector.load %arg2[%c0_1, %c0_2, %c0_3] : memref<1x4x256xf32, #tpu.memory_space<vmem>>, vector<1x4x256xf32>
    %19 = vector.shape_cast %18 : vector<1x4x256xf32> to vector<4x256xf32>
    %c1_i32 = arith.constant 1 : i32
    %20 = tpu.dynamic_rotate %19 by %c1_i32 dim 1 : vector<4x256xf32>, i32 -> vector<4x256xf32>
    %c255_i32 = arith.constant 255 : i32
    %21 = tpu.dynamic_rotate %19 by %c255_i32 dim 1 : vector<4x256xf32>, i32 -> vector<4x256xf32>
    %22 = arith.select %5, %21, %20 : vector<4x256xi1>, vector<4x256xf32>
    %23 = arith.select %9, %20, %21 : vector<4x256xi1>, vector<4x256xf32>
    %c16_i32_4 = arith.constant 16 : i32
    %24 = tpu.dynamic_rotate %22 by %c16_i32_4 dim 1 : vector<4x256xf32>, i32 -> vector<4x256xf32>
    %c240_i32_5 = arith.constant 240 : i32
    %25 = tpu.dynamic_rotate %22 by %c240_i32_5 dim 1 : vector<4x256xf32>, i32 -> vector<4x256xf32>
    %26 = arith.select %13, %25, %24 : vector<4x256xi1>, vector<4x256xf32>
    %27 = arith.select %17, %24, %25 : vector<4x256xi1>, vector<4x256xf32>
    %c0_6 = arith.constant 0 : index
    %c0_7 = arith.constant 0 : index
    %28 = vector.load %arg6[%c0_6, %c0_7] : memref<36x256xf32, #tpu.memory_space<vmem>>, vector<4x256xf32>
    tpu.vector_store %arg6[%c0_6, %c0_7], %26 {strides = array<i32>} : memref<36x256xf32, #tpu.memory_space<vmem>>, vector<4x256xf32>,
    %c12 = arith.constant 12 : index
    %c0_8 = arith.constant 0 : index
    %29 = vector.load %arg6[%c12, %c0_8] : memref<36x256xf32, #tpu.memory_space<vmem>>, vector<4x256xf32>
    tpu.vector_store %arg6[%c12, %c0_8], %22 {strides = array<i32>} : memref<36x256xf32, #tpu.memory_space<vmem>>, vector<4x256xf32>,
    %c24 = arith.constant 24 : index
    %c0_9 = arith.constant 0 : index
    %30 = vector.load %arg6[%c24, %c0_9] : memref<36x256xf32, #tpu.memory_space<vmem>>, vector<4x256xf32>
    tpu.vector_store %arg6[%c24, %c0_9], %27 {strides = array<i32>} : memref<36x256xf32, #tpu.memory_space<vmem>>, vector<4x256xf32>,
    %c16_i32_10 = arith.constant 16 : i32
    %31 = tpu.dynamic_rotate %19 by %c16_i32_10 dim 1 : vector<4x256xf32>, i32 -> vector<4x256xf32>
    %c240_i32_11 = arith.constant 240 : i32
    %32 = tpu.dynamic_rotate %19 by %c240_i32_11 dim 1 : vector<4x256xf32>, i32 -> vector<4x256xf32>
    %33 = arith.select %13, %32, %31 : vector<4x256xi1>, vector<4x256xf32>
    %34 = arith.select %17, %31, %32 : vector<4x256xi1>, vector<4x256xf32>
    %c4 = arith.constant 4 : index
    %c0_12 = arith.constant 0 : index
    %35 = vector.load %arg6[%c4, %c0_12] : memref<36x256xf32, #tpu.memory_space<vmem>>, vector<4x256xf32>
    tpu.vector_store %arg6[%c4, %c0_12], %33 {strides = array<i32>} : memref<36x256xf32, #tpu.memory_space<vmem>>, vector<4x256xf32>,
    %c16 = arith.constant 16 : index
    %c0_13 = arith.constant 0 : index
    %36 = vector.load %arg6[%c16, %c0_13] : memref<36x256xf32, #tpu.memory_space<vmem>>, vector<4x256xf32>
    tpu.vector_store %arg6[%c16, %c0_13], %19 {strides = array<i32>} : memref<36x256xf32, #tpu.memory_space<vmem>>, vector<4x256xf32>,
    %c28 = arith.constant 28 : index
    %c0_14 = arith.constant 0 : index
    %37 = vector.load %arg6[%c28, %c0_14] : memref<36x256xf32, #tpu.memory_space<vmem>>, vector<4x256xf32>
    tpu.vector_store %arg6[%c28, %c0_14], %34 {strides = array<i32>} : memref<36x256xf32, #tpu.memory_space<vmem>>, vector<4x256xf32>,
    %c16_i32_15 = arith.constant 16 : i32
    %38 = tpu.dynamic_rotate %23 by %c16_i32_15 dim 1 : vector<4x256xf32>, i32 -> vector<4x256xf32>
    %c240_i32_16 = arith.constant 240 : i32
    %39 = tpu.dynamic_rotate %23 by %c240_i32_16 dim 1 : vector<4x256xf32>, i32 -> vector<4x256xf32>
    %40 = arith.select %13, %39, %38 : vector<4x256xi1>, vector<4x256xf32>
    %41 = arith.select %17, %38, %39 : vector<4x256xi1>, vector<4x256xf32>
    %c8 = arith.constant 8 : index
    %c0_17 = arith.constant 0 : index
    %42 = vector.load %arg6[%c8, %c0_17] : memref<36x256xf32, #tpu.memory_space<vmem>>, vector<4x256xf32>
    tpu.vector_store %arg6[%c8, %c0_17], %40 {strides = array<i32>} : memref<36x256xf32, #tpu.memory_space<vmem>>, vector<4x256xf32>,
    %c20 = arith.constant 20 : index
    %c0_18 = arith.constant 0 : index
    %43 = vector.load %arg6[%c20, %c0_18] : memref<36x256xf32, #tpu.memory_space<vmem>>, vector<4x256xf32>
    tpu.vector_store %arg6[%c20, %c0_18], %23 {strides = array<i32>} : memref<36x256xf32, #tpu.memory_space<vmem>>, vector<4x256xf32>,
    %c32 = arith.constant 32 : index
    %c0_19 = arith.constant 0 : index
    %44 = vector.load %arg6[%c32, %c0_19] : memref<36x256xf32, #tpu.memory_space<vmem>>, vector<4x256xf32>
    tpu.vector_store %arg6[%c32, %c0_19], %41 {strides = array<i32>} : memref<36x256xf32, #tpu.memory_space<vmem>>, vector<4x256xf32>,
    %c0_20 = arith.constant 0 : index
    %c0_21 = arith.constant 0 : index
    %45 = vector.load %arg3[%c0_20, %c0_21] : memref<4x36xf32, #tpu.memory_space<vmem>>, vector<4x36xf32>
    %c0_22 = arith.constant 0 : index
    %c0_23 = arith.constant 0 : index
    %46 = vector.load %arg6[%c0_22, %c0_23] : memref<36x256xf32, #tpu.memory_space<vmem>>, vector<36x256xf32>
    %cst = arith.constant dense<0.000000e+00> : vector<4x256xf32>
    %47 = tpu.matmul %45, %46, %cst {dimension_numbers = #tpu.dot_dimension_numbers<[1], [0], [0], [1], [0, 0, 1, 1], [], []>} : vector<4x36xf32>, vector<36x256xf32>, vector<4x256xf32> -> vector<4x256xf32>
    %cst_24 = arith.constant dense<0.000000e+00> : vector<4xf32>
    %48 = vector.multi_reduction <add>, %47, %cst_24 [1] : vector<4x256xf32> to vector<4xf32>
    %49 = vector.shape_cast %48 : vector<4xf32> to vector<4x1xf32>
    %cst_25 = arith.constant 2.560000e+02 : f32
    %50 = vector.broadcast %cst_25 : f32 to vector<4x1xf32>
    %51 = arith.divf %49, %50 : vector<4x1xf32>
    %52 = vector.broadcast %51 : vector<4x1xf32> to vector<4x256xf32>
    %53 = arith.subf %47, %52 : vector<4x256xf32>
    %54 = arith.mulf %53, %53 : vector<4x256xf32>
    %cst_26 = arith.constant dense<0.000000e+00> : vector<4xf32>
    %55 = vector.multi_reduction <add>, %54, %cst_26 [1] : vector<4x256xf32> to vector<4xf32>
    %56 = vector.shape_cast %55 : vector<4xf32> to vector<4x1xf32>
    %cst_27 = arith.constant 2.560000e+02 : f32
    %57 = vector.broadcast %cst_27 : f32 to vector<4x1xf32>
    %58 = arith.divf %56, %57 : vector<4x1xf32>
    %cst_28 = arith.constant 9.99999974E-6 : f32
    %59 = vector.broadcast %cst_28 : f32 to vector<4x1xf32>
    %60 = arith.addf %58, %59 : vector<4x1xf32>
    %61 = math.rsqrt %60 : vector<4x1xf32>
    %62 = vector.broadcast %61 : vector<4x1xf32> to vector<4x256xf32>
    %63 = arith.mulf %53, %62 : vector<4x256xf32>
    %cst_29 = arith.constant 0.000000e+00 : f32
    %64 = vector.broadcast %cst_29 : f32 to vector<4x256xf32>
    %65 = arith.maximumf %63, %64 : vector<4x256xf32>
    %c1_i32_30 = arith.constant 1 : i32
    %66 = tpu.dynamic_rotate %65 by %c1_i32_30 dim 1 : vector<4x256xf32>, i32 -> vector<4x256xf32>
    %c255_i32_31 = arith.constant 255 : i32
    %67 = tpu.dynamic_rotate %65 by %c255_i32_31 dim 1 : vector<4x256xf32>, i32 -> vector<4x256xf32>
    %68 = arith.select %5, %67, %66 : vector<4x256xi1>, vector<4x256xf32>
    %69 = arith.select %9, %66, %67 : vector<4x256xi1>, vector<4x256xf32>
    %c16_i32_32 = arith.constant 16 : i32
    %70 = tpu.dynamic_rotate %68 by %c16_i32_32 dim 1 : vector<4x256xf32>, i32 -> vector<4x256xf32>
    %c240_i32_33 = arith.constant 240 : i32
    %71 = tpu.dynamic_rotate %68 by %c240_i32_33 dim 1 : vector<4x256xf32>, i32 -> vector<4x256xf32>
    %72 = arith.select %13, %71, %70 : vector<4x256xi1>, vector<4x256xf32>
    %73 = arith.select %17, %70, %71 : vector<4x256xi1>, vector<4x256xf32>
    %c0_34 = arith.constant 0 : index
    %c0_35 = arith.constant 0 : index
    %74 = vector.load %arg6[%c0_34, %c0_35] : memref<36x256xf32, #tpu.memory_space<vmem>>, vector<4x256xf32>
    tpu.vector_store %arg6[%c0_34, %c0_35], %72 {strides = array<i32>} : memref<36x256xf32, #tpu.memory_space<vmem>>, vector<4x256xf32>,
    %c12_36 = arith.constant 12 : index
    %c0_37 = arith.constant 0 : index
    %75 = vector.load %arg6[%c12_36, %c0_37] : memref<36x256xf32, #tpu.memory_space<vmem>>, vector<4x256xf32>
    tpu.vector_store %arg6[%c12_36, %c0_37], %68 {strides = array<i32>} : memref<36x256xf32, #tpu.memory_space<vmem>>, vector<4x256xf32>,
    %c24_38 = arith.constant 24 : index
    %c0_39 = arith.constant 0 : index
    %76 = vector.load %arg6[%c24_38, %c0_39] : memref<36x256xf32, #tpu.memory_space<vmem>>, vector<4x256xf32>
    tpu.vector_store %arg6[%c24_38, %c0_39], %73 {strides = array<i32>} : memref<36x256xf32, #tpu.memory_space<vmem>>, vector<4x256xf32>,
    %c16_i32_40 = arith.constant 16 : i32
    %77 = tpu.dynamic_rotate %65 by %c16_i32_40 dim 1 : vector<4x256xf32>, i32 -> vector<4x256xf32>
    %c240_i32_41 = arith.constant 240 : i32
    %78 = tpu.dynamic_rotate %65 by %c240_i32_41 dim 1 : vector<4x256xf32>, i32 -> vector<4x256xf32>
    %79 = arith.select %13, %78, %77 : vector<4x256xi1>, vector<4x256xf32>
    %80 = arith.select %17, %77, %78 : vector<4x256xi1>, vector<4x256xf32>
    %c4_42 = arith.constant 4 : index
    %c0_43 = arith.constant 0 : index
    %81 = vector.load %arg6[%c4_42, %c0_43] : memref<36x256xf32, #tpu.memory_space<vmem>>, vector<4x256xf32>
    tpu.vector_store %arg6[%c4_42, %c0_43], %79 {strides = array<i32>} : memref<36x256xf32, #tpu.memory_space<vmem>>, vector<4x256xf32>,
    %c16_44 = arith.constant 16 : index
    %c0_45 = arith.constant 0 : index
    %82 = vector.load %arg6[%c16_44, %c0_45] : memref<36x256xf32, #tpu.memory_space<vmem>>, vector<4x256xf32>
    tpu.vector_store %arg6[%c16_44, %c0_45], %65 {strides = array<i32>} : memref<36x256xf32, #tpu.memory_space<vmem>>, vector<4x256xf32>,
    %c28_46 = arith.constant 28 : index
    %c0_47 = arith.constant 0 : index
    %83 = vector.load %arg6[%c28_46, %c0_47] : memref<36x256xf32, #tpu.memory_space<vmem>>, vector<4x256xf32>
    tpu.vector_store %arg6[%c28_46, %c0_47], %80 {strides = array<i32>} : memref<36x256xf32, #tpu.memory_space<vmem>>, vector<4x256xf32>,
    %c16_i32_48 = arith.constant 16 : i32
    %84 = tpu.dynamic_rotate %69 by %c16_i32_48 dim 1 : vector<4x256xf32>, i32 -> vector<4x256xf32>
    %c240_i32_49 = arith.constant 240 : i32
    %85 = tpu.dynamic_rotate %69 by %c240_i32_49 dim 1 : vector<4x256xf32>, i32 -> vector<4x256xf32>
    %86 = arith.select %13, %85, %84 : vector<4x256xi1>, vector<4x256xf32>
    %87 = arith.select %17, %84, %85 : vector<4x256xi1>, vector<4x256xf32>
    %c8_50 = arith.constant 8 : index
    %c0_51 = arith.constant 0 : index
    %88 = vector.load %arg6[%c8_50, %c0_51] : memref<36x256xf32, #tpu.memory_space<vmem>>, vector<4x256xf32>
    tpu.vector_store %arg6[%c8_50, %c0_51], %86 {strides = array<i32>} : memref<36x256xf32, #tpu.memory_space<vmem>>, vector<4x256xf32>,
    %c20_52 = arith.constant 20 : index
    %c0_53 = arith.constant 0 : index
    %89 = vector.load %arg6[%c20_52, %c0_53] : memref<36x256xf32, #tpu.memory_space<vmem>>, vector<4x256xf32>
    tpu.vector_store %arg6[%c20_52, %c0_53], %69 {strides = array<i32>} : memref<36x256xf32, #tpu.memory_space<vmem>>, vector<4x256xf32>,
    %c32_54 = arith.constant 32 : index
    %c0_55 = arith.constant 0 : index
    %90 = vector.load %arg6[%c32_54, %c0_55] : memref<36x256xf32, #tpu.memory_space<vmem>>, vector<4x256xf32>
    tpu.vector_store %arg6[%c32_54, %c0_55], %87 {strides = array<i32>} : memref<36x256xf32, #tpu.memory_space<vmem>>, vector<4x256xf32>,
    %c0_56 = arith.constant 0 : index
    %c0_57 = arith.constant 0 : index
    %91 = vector.load %arg4[%c0_56, %c0_57] : memref<4x36xf32, #tpu.memory_space<vmem>>, vector<4x36xf32>
    %c0_58 = arith.constant 0 : index
    %c0_59 = arith.constant 0 : index
    %92 = vector.load %arg6[%c0_58, %c0_59] : memref<36x256xf32, #tpu.memory_space<vmem>>, vector<36x256xf32>
    %cst_60 = arith.constant dense<0.000000e+00> : vector<4x256xf32>
    %93 = tpu.matmul %91, %92, %cst_60 {dimension_numbers = #tpu.dot_dimension_numbers<[1], [0], [0], [1], [0, 0, 1, 1], [], []>} : vector<4x36xf32>, vector<36x256xf32>, vector<4x256xf32> -> vector<4x256xf32>
    %cst_61 = arith.constant dense<0.000000e+00> : vector<4xf32>
    %94 = vector.multi_reduction <add>, %93, %cst_61 [1] : vector<4x256xf32> to vector<4xf32>
    %95 = vector.shape_cast %94 : vector<4xf32> to vector<4x1xf32>
    %cst_62 = arith.constant 2.560000e+02 : f32
    %96 = vector.broadcast %cst_62 : f32 to vector<4x1xf32>
    %97 = arith.divf %95, %96 : vector<4x1xf32>
    %98 = vector.broadcast %97 : vector<4x1xf32> to vector<4x256xf32>
    %99 = arith.subf %93, %98 : vector<4x256xf32>
    %100 = arith.mulf %99, %99 : vector<4x256xf32>
    %cst_63 = arith.constant dense<0.000000e+00> : vector<4xf32>
    %101 = vector.multi_reduction <add>, %100, %cst_63 [1] : vector<4x256xf32> to vector<4xf32>
    %102 = vector.shape_cast %101 : vector<4xf32> to vector<4x1xf32>
    %cst_64 = arith.constant 2.560000e+02 : f32
    %103 = vector.broadcast %cst_64 : f32 to vector<4x1xf32>
    %104 = arith.divf %102, %103 : vector<4x1xf32>
    %cst_65 = arith.constant 9.99999974E-6 : f32
    %105 = vector.broadcast %cst_65 : f32 to vector<4x1xf32>
    %106 = arith.addf %104, %105 : vector<4x1xf32>
    %107 = math.rsqrt %106 : vector<4x1xf32>
    %108 = vector.broadcast %107 : vector<4x1xf32> to vector<4x256xf32>
    %109 = arith.mulf %99, %108 : vector<4x256xf32>
    %c0_66 = arith.constant 0 : index
    %c0_67 = arith.constant 0 : index
    %c0_68 = arith.constant 0 : index
    %110 = vector.load %arg2[%c0_66, %c0_67, %c0_68] : memref<1x4x256xf32, #tpu.memory_space<vmem>>, vector<1x4x256xf32>
    %111 = vector.shape_cast %110 : vector<1x4x256xf32> to vector<4x256xf32>
    %112 = arith.addf %111, %109 : vector<4x256xf32>
    %c0_69 = arith.constant 0 : index
    %c0_70 = arith.constant 0 : index
    %c0_71 = arith.constant 0 : index
    %113 = vector.load %arg5[%c0_69, %c0_70, %c0_71] : memref<1x4x256xf32, #tpu.memory_space<vmem>>, vector<1x4x256xf32>
    %114 = vector.shape_cast %113 : vector<1x4x256xf32> to vector<4x256xf32>
    %115 = vector.shape_cast %112 : vector<4x256xf32> to vector<1x4x256xf32>
    tpu.vector_store %arg5[%c0_69, %c0_70, %c0_71], %115 {strides = array<i32>} : memref<1x4x256xf32, #tpu.memory_space<vmem>>, vector<1x4x256xf32>,
    return
  }
  func.func @transform_0(%arg0: i32) -> (i32, i32) {
    %c0_i32 = arith.constant 0 : i32
    %c0_i32_0 = arith.constant 0 : i32
    %c0_i32_1 = arith.constant 0 : i32
    return %c0_i32, %c0_i32_0 : i32, i32
  }
  func.func @transform_1(%arg0: i32) -> (i32, i32, i32) {
    %c0_i32 = arith.constant 0 : i32
    %c0_i32_0 = arith.constant 0 : i32
    %c0_i32_1 = arith.constant 0 : i32
    return %arg0, %c0_i32, %c0_i32_0 : i32, i32, i32
  }
  func.func @transform_2(%arg0: i32) -> (i32, i32) {
    %c0_i32 = arith.constant 0 : i32
    %c0_i32_0 = arith.constant 0 : i32
    %c0_i32_1 = arith.constant 0 : i32
    return %c0_i32, %c0_i32_0 : i32, i32
  }
  func.func @transform_3(%arg0: i32) -> (i32, i32) {
    %c0_i32 = arith.constant 0 : i32
    %c0_i32_0 = arith.constant 0 : i32
    %c0_i32_1 = arith.constant 0 : i32
    return %c0_i32, %c0_i32_0 : i32, i32
  }
  func.func @transform_4(%arg0: i32) -> (i32, i32, i32) {
    %c0_i32 = arith.constant 0 : i32
    %c0_i32_0 = arith.constant 0 : i32
    %c0_i32_1 = arith.constant 0 : i32
    return %arg0, %c0_i32, %c0_i32_0 : i32, i32, i32
  }
}

</mosaic_0001>

<llo_original>
// kernel: tpu_custom_call.1
$region0: #{tpu_custom_call.1}
  #allocation0 [shape = 'u32[]', space=smem, size = 0x4, offset = 0x4, fixed_abs, tag = 'smem constant byte address 0x4 - core index']
  #allocation1 [shape = 'u32[144,128]{1,0:T(1,128)}', space=vmem, size = 0x12000, scoped, tag = 'internal scratch']
  #allocation2 [shape = 'f32[36,256]{1,0:T(8,128)}', space=vmem, size = 0xa000, scoped, tag = 'scratch operand']
  %s0 = inlined_call_operand.hbm [shape: s32[1,256], index: 0, kind: input, shape index: {}]
  %s1 = inlined_call_operand.hbm [shape: f32[2,4,256], index: 1, kind: input, shape index: {}]
  %s2 = inlined_call_operand.vmem [shape: f32[4,36], index: 2, kind: input, shape index: {}]
  %s3 = inlined_call_operand.vmem [shape: f32[4,36], index: 3, kind: input, shape index: {}]
  %s4 = inlined_call_operand.hbm [shape: f32[2,4,256], index: 4, kind: output, shape index: {}]
  %s5 = sld [smem:[#allocation0]]
  $region57: #{tpu_custom_call.1} parent=0
    _
  %s7 = ssub.s32 1, %s5
  %s8 = scalar_select 0, %s7, %s5
  $region1: #{tpu_custom_call.1} parent=0
    #allocation3 [shape = 'u8[1024]{0}', space=vmem, size = 0x400, scoped, tag = 'input window, operand 0, single buffered']
    #allocation4 [shape = 's32[2]{0}', space=sflag, size = 0x8, scoped, tag = 'scoped memory for tpu_custom_call.1']
    #allocation5 [shape = 's32[2]{0}', space=sflag, size = 0x8, scoped, tag = 'scoped memory for tpu_custom_call.1']
    #allocation6 [shape = 'u8[8192]{0}', space=vmem, size = 0x2000, scoped, tag = 'input window, operand 1']
    #allocation7 [shape = 's32[2]{0}', space=sflag, size = 0x8, scoped, tag = 'scoped memory for tpu_custom_call.1']
    #allocation8 [shape = 'u8[8192]{0}', space=vmem, size = 0x2000, scoped, tag = 'output window, operand 0']
    %9 = vsyncpa [#allocation4], 0
    %10 = vsyncpa [#allocation7], 0
    %s11 = scalar_lea.sflag [#allocation7], 1
    %12 = vsyncpa %s11, 0
    %13 = vsyncpa [#allocation5], 0
    %s14 = scalar_lea.sflag [#allocation5], 1
    %15 = vsyncpa %s14, 0
    loop: start=0, step=1, limit=4
    $region2: #{tpu_custom_call.1} parent=1 // loop_pre_header
      _
    $region3: #{tpu_custom_call.1} parent=1 // loop_header
      %s17 = sphi 0, %s21
      %p18 = scmp.ge.s32.totalorder %s17, 4
      %s25 = sphi 0, %s25
      %s27 = sphi 0, %s25
      %s28 = sphi 0, %s27
      %s42 = sphi 0, %s28
      %s48 = sphi 0, %s50
      %s51 = sphi 0, %s48
      %s52 = sphi 0, %s51
      %s68 = sphi 0, %s52
      %s72 = sphi 0, %s72
      %s74 = sphi 0, %s72
      %s75 = sphi 0, %s74
      %s89 = sphi 0, %s75
      %s93 = sphi 0, %s93
      %s95 = sphi 0, %s93
      %s96 = sphi 0, %s95
      %s110 = sphi 0, %s96
      %s116 = sphi 0, %s118
      %s119 = sphi 0, %s116
      %s120 = sphi 0, %s119
      %s136 = sphi 0, %s120
    $region4: #{tpu_custom_call.1} parent=1 // loop_header_branch
      %20 = sbr.rel (%p18) target = $region8
    $region5: #{tpu_custom_call.1} parent=1 // loop_body
      %s22 = ssub.s32 %s17, 1
      %s23 = ssub.s32 %s17, 2
      %s24 = sadd.s32 %s17, 1
      %s26 = sadd.s32 %s25, 1
      %p29 = scmp.eq.s32.totalorder %s17, 1
      %p30 = scmp.ne.s32.totalorder %s25, %s27
      %p31 = scmp.eq.s32.totalorder %s17, 0
      %p32 = por %p30, %p31
      %p33 = scmp.ne.s32.totalorder %s25, %s27
      %p34 = scmp.eq.s32.totalorder %s22, 1
      %p35 = por %p33, %p34
      %p36 = scmp.ne.s32.totalorder %s27, %s28
      %p37 = scmp.eq.s32.totalorder %s22, 0
      %p38 = por %p36, %p37
      %p39 = scmp.ne.s32.totalorder %s27, %s28
      %p40 = scmp.eq.s32.totalorder %s23, 1
      %p41 = por %p39, %p40
      %p43 = scmp.ne.s32.totalorder %s28, %s42
      %p44 = scmp.eq.s32.totalorder %s23, 0
      %p45 = por %p43, %p44
      %s46 = ssub.s32 %s17, %s24
      %p47 = scmp.eq.s32.totalorder %s46, 0
      %s49 = sadd.s32 %s48, 1
      %s50 = scalar_select %p47, %s48, %s49
      %p53 = pneg %p47
      %p54 = scmp.eq.s32.totalorder %s17, 1
      %p55 = por %p53, %p54
      %p56 = scmp.ne.s32.totalorder %s48, %s51
      %p57 = scmp.eq.s32.totalorder %s17, 0
      %p58 = por %p56, %p57
      %p59 = scmp.ne.s32.totalorder %s48, %s51
      %p60 = scmp.eq.s32.totalorder %s22, 1
      %p61 = por %p59, %p60
      %p62 = scmp.ne.s32.totalorder %s51, %s52
      %p63 = scmp.eq.s32.totalorder %s22, 0
      %p64 = por %p62, %p63
      %p65 = scmp.ne.s32.totalorder %s51, %s52
      %p66 = scmp.eq.s32.totalorder %s23, 1
      %p67 = por %p65, %p66
      %p69 = scmp.ne.s32.totalorder %s52, %s68
      %p70 = scmp.eq.s32.totalorder %s23, 0
      %p71 = por %p69, %p70
      %s73 = sadd.s32 %s72, 1
      %p76 = scmp.eq.s32.totalorder %s17, 1
      %p77 = scmp.ne.s32.totalorder %s72, %s74
      %p78 = scmp.eq.s32.totalorder %s17, 0
      %p79 = por %p77, %p78
      %p80 = scmp.ne.s32.totalorder %s72, %s74
      %p81 = scmp.eq.s32.totalorder %s22, 1
      %p82 = por %p80, %p81
      %p83 = scmp.ne.s32.totalorder %s74, %s75
      %p84 = scmp.eq.s32.totalorder %s22, 0
      %p85 = por %p83, %p84
      %p86 = scmp.ne.s32.totalorder %s74, %s75
      %p87 = scmp.eq.s32.totalorder %s23, 1
      %p88 = por %p86, %p87
      %p90 = scmp.ne.s32.totalorder %s75, %s89
      %p91 = scmp.eq.s32.totalorder %s23, 0
      %p92 = por %p90, %p91
      %s94 = sadd.s32 %s93, 1
      %p97 = scmp.eq.s32.totalorder %s17, 1
      %p98 = scmp.ne.s32.totalorder %s93, %s95
      %p99 = scmp.eq.s32.totalorder %s17, 0
      %p100 = por %p98, %p99
      %p101 = scmp.ne.s32.totalorder %s93, %s95
      %p102 = scmp.eq.s32.totalorder %s22, 1
      %p103 = por %p101, %p102
      %p104 = scmp.ne.s32.totalorder %s95, %s96
      %p105 = scmp.eq.s32.totalorder %s22, 0
      %p106 = por %p104, %p105
      %p107 = scmp.ne.s32.totalorder %s95, %s96
      %p108 = scmp.eq.s32.totalorder %s23, 1
      %p109 = por %p107, %p108
      %p111 = scmp.ne.s32.totalorder %s96, %s110
      %p112 = scmp.eq.s32.totalorder %s23, 0
      %p113 = por %p111, %p112
      %s114 = ssub.s32 %s17, %s24
      %p115 = scmp.eq.s32.totalorder %s114, 0
      %s117 = sadd.s32 %s116, 1
      %s118 = scalar_select %p115, %s116, %s117
      %p121 = pneg %p115
      %p122 = scmp.eq.s32.totalorder %s17, 1
      %p123 = por %p121, %p122
      %p124 = scmp.ne.s32.totalorder %s116, %s119
      %p125 = scmp.eq.s32.totalorder %s17, 0
      %p126 = por %p124, %p125
      %p127 = scmp.ne.s32.totalorder %s116, %s119
      %p128 = scmp.eq.s32.totalorder %s22, 1
      %p129 = por %p127, %p128
      %p130 = scmp.ne.s32.totalorder %s119, %s120
      %p131 = scmp.eq.s32.totalorder %s22, 0
      %p132 = por %p130, %p131
      %p133 = scmp.ne.s32.totalorder %s119, %s120
      %p134 = scmp.eq.s32.totalorder %s23, 1
      %p135 = por %p133, %p134
      %p137 = scmp.ne.s32.totalorder %s120, %s136
      %p138 = scmp.eq.s32.totalorder %s23, 0
      %p139 = por %p137, %p138
      %p140 = scmp.le.s32.totalorder 1, %s17
      %p141 = scmp.lt.s32.totalorder %s17, 3
      %p142 = pnand %p140, %p141
      %p143 = pneg %p142
      // Predicated region
      $region9: #{tpu_custom_call.1} parent=5 // pred_check
        _
      $region10: #{tpu_custom_call.1} parent=5 // pred_check_branch
        %145 = sbr.rel (%p142) target = $region12
      $region11: #{tpu_custom_call.1} parent=5 // pred_region
        %s146 = ssub.s32 %s17, 1
        // Predicated region
        $region13: #{tpu_custom_call.1} parent=11 // pred_check
          %p147 = pneg %p38
        $region14: #{tpu_custom_call.1} parent=11 // pred_check_branch
          %149 = sbr.rel (%p147) target = $region16
        $region15: #{tpu_custom_call.1} parent=11 // pred_region
          %s151 = ssub.s32 32, 32
          %152 = vsyncadd [#allocation4], %s151
          %s154 = sshll.u32 [#allocation3], 4
          %s155 = int_to_ptr.vmem [resolvable:$true] %s154
          %157 = dma.hbm_to_vmem [thread:$0]  %s0, 32, %s155, [#allocation4]
        $region16: #{tpu_custom_call.1} parent=11 // pred_fallthru
          _
        // Predicated region
        $region17: #{tpu_custom_call.1} parent=11 // pred_check
          %p158 = pneg %p85
        $region18: #{tpu_custom_call.1} parent=11 // pred_check_branch
          %160 = sbr.rel (%p158) target = $region20
        $region19: #{tpu_custom_call.1} parent=11 // pred_region
          _
        $region20: #{tpu_custom_call.1} parent=11 // pred_fallthru
          _
        // Predicated region
        $region21: #{tpu_custom_call.1} parent=11 // pred_check
          %p161 = pneg %p106
        $region22: #{tpu_custom_call.1} parent=11 // pred_check_branch
          %163 = sbr.rel (%p161) target = $region24
        $region23: #{tpu_custom_call.1} parent=11 // pred_region
          _
        $region24: #{tpu_custom_call.1} parent=11 // pred_fallthru
          _
      $region12: #{tpu_custom_call.1} parent=5 // pred_fallthru
        _
      %p164 = scmp.lt.s32.totalorder %s17, 2
      // Predicated region
      $region25: #{tpu_custom_call.1} parent=5 // pred_check
        %p165 = pneg %p164
      $region26: #{tpu_custom_call.1} parent=5 // pred_check_branch
        %167 = sbr.rel (%p165) target = $region28
      $region27: #{tpu_custom_call.1} parent=5 // pred_region
        // Predicated region
        $region29: #{tpu_custom_call.1} parent=27 // pred_check
          %p168 = pneg %p58
        $region30: #{tpu_custom_call.1} parent=27 // pred_check_branch
          %170 = sbr.rel (%p168) target = $region32
        $region31: #{tpu_custom_call.1} parent=27 // pred_region
          %s171 = sand.u32 %s48, 1
          %s172 = scalar_lea.sflag [#allocation7], %s171
          %s173 = sand.u32 %s48, 1
          %s174 = smul.addr %s173, 8
          %s175 = scalar_lea.vmem [#allocation6], %s174
          %s177 = ssub.s32 128, 128
          %178 = vsyncadd %s172, %s177
          %s179 = smul.addr %s17, 2
          %s180 = smul.addr %s179, 64
          %s181 = scalar_lea.hbm %s1, %s180
          %s183 = sshll.u32 %s175, 4
          %s184 = int_to_ptr.vmem [resolvable:$true] %s183
          %186 = dma.hbm_to_vmem [thread:$0]  %s181, 128, %s184, %s172
        $region32: #{tpu_custom_call.1} parent=27 // pred_fallthru
          _
      $region28: #{tpu_custom_call.1} parent=5 // pred_fallthru
        _
      %p187 = scmp.le.s32.totalorder 1, %s17
      %p188 = scmp.lt.s32.totalorder %s17, 3
      %p189 = pnand %p187, %p188
      %p190 = pneg %p189
      // Predicated region
      $region33: #{tpu_custom_call.1} parent=5 // pred_check
        _
      $region34: #{tpu_custom_call.1} parent=5 // pred_check_branch
        %192 = sbr.rel (%p189) target = $region36
      $region35: #{tpu_custom_call.1} parent=5 // pred_region
        %s193 = ssub.s32 %s17, 1
        // Predicated region
        $region37: #{tpu_custom_call.1} parent=35 // pred_check
          %p194 = pneg %p38
        $region38: #{tpu_custom_call.1} parent=35 // pred_check_branch
          %196 = sbr.rel (%p194) target = $region40
        $region39: #{tpu_custom_call.1} parent=35 // pred_region
          %197 = dma.done [#allocation4], 32
        $region40: #{tpu_custom_call.1} parent=35 // pred_fallthru
          _
        %s198 = sand.u32 %s51, 1
        %s199 = scalar_lea.sflag [#allocation7], %s198
        %s200 = sand.u32 %s51, 1
        %s201 = smul.addr %s200, 8
        %s202 = scalar_lea.vmem [#allocation6], %s201
        // Predicated region
        $region41: #{tpu_custom_call.1} parent=35 // pred_check
          %p203 = pneg %p64
        $region42: #{tpu_custom_call.1} parent=35 // pred_check_branch
          %205 = sbr.rel (%p203) target = $region44
        $region43: #{tpu_custom_call.1} parent=35 // pred_region
          %206 = dma.done %s199, 128
        $region44: #{tpu_custom_call.1} parent=35 // pred_fallthru
          _
        %p207 = pneg %p38
        %p208 = pneg %p35
        %s209 = sand.u32 %s51, 1
        %s210 = scalar_lea.sflag [#allocation7], %s209
        %s211 = sand.u32 %s51, 1
        %s212 = smul.addr %s211, 8
        %s213 = scalar_lea.vmem [#allocation6], %s212
        %p214 = pneg %p64
        %p215 = pneg %p61
        %p216 = pneg %p85
        %p217 = pneg %p82
        %p218 = pneg %p106
        %p219 = pneg %p103
        %p220 = pneg %p132
        %p221 = pneg %p129
        %s222 = sand.u32 %s119, 1
        %s223 = scalar_lea.sflag [#allocation5], %s222
        %s224 = sand.u32 %s119, 1
        %s225 = smul.addr %s224, 8
        %s226 = scalar_lea.vmem [#allocation8], %s225
        %v227 = vld [vmem:[#allocation3] sm:$0x3]
        %v228 = vlaneseq
        %v229 = vand.u32 %v228, 127
        %v230 = vadd.s32 %v229, 128
        %vm231 = vcmp.eq.s32.totalorder %v227, 0
        %v232 = vsel %vm231, 1, 0
        %v233 = vlaneseq
        %v234 = vshrl.u32 %v233, 7
        %v235 = vsub.s32 0, %v234
        %v236 = vrot.slane %v232, %v235
        %v237 = vlaneseq
        %v238 = vshrl.u32 %v237, 7
        %v239 = vsub.s32 1, %v238
        %v240 = vrot.slane %v232, %v239
        %vm241 = vcmp.eq.s32.totalorder %v236, 1
        %vm242 = vcmp.eq.s32.totalorder %v240, 1
        %vm243 = vcmp.eq.s32.totalorder %v227, 15
        %v244 = vsel %vm243, 1, 0
        %v245 = vlaneseq
        %v246 = vshrl.u32 %v245, 7
        %v247 = vsub.s32 0, %v246
        %v248 = vrot.slane %v244, %v247
        %v249 = vlaneseq
        %v250 = vshrl.u32 %v249, 7
        %v251 = vsub.s32 1, %v250
        %v252 = vrot.slane %v244, %v251
        %vm253 = vcmp.eq.s32.totalorder %v248, 1
        %vm254 = vcmp.eq.s32.totalorder %v252, 1
        %vm255 = vcmp.lt.s32.totalorder %v229, 16
        %vm256 = vcmp.lt.s32.totalorder %v230, 16
        %v257 = vsel %vm255, 1, 0
        %v258 = vsel %vm256, 1, 0
        %vm259 = vcmp.eq.s32.totalorder %v257, 1
        %vm260 = vcmp.eq.s32.totalorder %v258, 1
        %vm261 = vcmp.ge.s32.totalorder %v229, 240
        %vm262 = vcmp.ge.s32.totalorder %v230, 240
        %v263 = vsel %vm261, 1, 0
        %v264 = vsel %vm262, 1, 0
        %vm265 = vcmp.eq.s32.totalorder %v263, 1
        %vm266 = vcmp.eq.s32.totalorder %v264, 1
        %v267 = vld [vmem:[%s202] sm:$0xff]
        %v269 = vcombine.high %v267, %v267
        %271 = vrot.lane.b32.xlu0 %v267, 1
        %v272 = vpop.permute.xlu0 %271
        %273 = vrot.lane.b32.xlu0 %v269, 1
        %v274 = vpop.permute.xlu0 %273
        %vm275 = vcmp.lt.s32.totalorder %v229, 1
        %v276 = vsel %vm275, %v272, %v274
        %v277 = vsel %vm275, %v274, %v272
        %278 = vrot.lane.b32.xlu0 %v267, 127
        %v279 = vpop.permute.xlu0 %278
        %280 = vrot.lane.b32.xlu0 %v269, 127
        %v281 = vpop.permute.xlu0 %280
        %vm282 = vcmp.lt.s32.totalorder %v229, 127
        %v283 = vsel %vm282, %v279, %v281
        %v284 = vsel %vm282, %v281, %v279
        %v285 = vsel %vm241, %v283, %v277
        %v286 = vsel %vm242, %v284, %v276
        %v287 = vsel %vm253, %v277, %v283
        %v288 = vsel %vm254, %v276, %v284
        %289 = vrot.lane.b32.xlu0 %v285, 16
        %v290 = vpop.permute.xlu0 %289
        %291 = vrot.lane.b32.xlu0 %v286, 16
        %v292 = vpop.permute.xlu0 %291
        %v293 = vsel %vm255, %v290, %v292
        %v294 = vsel %vm255, %v292, %v290
        %295 = vrot.lane.b32.xlu0 %v285, 112
        %v296 = vpop.permute.xlu0 %295
        %297 = vrot.lane.b32.xlu0 %v286, 112
        %v298 = vpop.permute.xlu0 %297
        %vm299 = vcmp.lt.s32.totalorder %v229, 112
        %v300 = vsel %vm299, %v296, %v298
        %v301 = vsel %vm299, %v298, %v296
        %v302 = vsel %vm259, %v300, %v294
        %v303 = vsel %vm260, %v301, %v293
        %v304 = vsel %vm265, %v294, %v300
        %v305 = vsel %vm266, %v293, %v301
        %306 = vst [vmem:[#allocation2] sm:$0xf] %v302
        %307 = vst [vmem:[#allocation2 + $0x8] sm:$0xf] %v303
        %v310 = vrot.slane %v285, 4
        %v311 = vrot.slane %v286, 4
        %314 = vst [vmem:[#allocation2 + $0x10] sm:$0xf0] %v310
        %315 = vst [vmem:[#allocation2 + $0x18] sm:$0xf0] %v311
        %316 = vst [vmem:[#allocation2 + $0x30] sm:$0xf] %v304
        %317 = vst [vmem:[#allocation2 + $0x38] sm:$0xf] %v305
        %318 = vrot.lane.b32.xlu0 %v267, 16
        %v319 = vpop.permute.xlu0 %318
        %320 = vrot.lane.b32.xlu0 %v269, 16
        %v321 = vpop.permute.xlu0 %320
        %v322 = vsel %vm255, %v319, %v321
        %v323 = vsel %vm255, %v321, %v319
        %324 = vrot.lane.b32.xlu0 %v267, 112
        %v325 = vpop.permute.xlu0 %324
        %326 = vrot.lane.b32.xlu0 %v269, 112
        %v327 = vpop.permute.xlu0 %326
        %v328 = vsel %vm299, %v325, %v327
        %v329 = vsel %vm299, %v327, %v325
        %v330 = vsel %vm259, %v328, %v323
        %v331 = vsel %vm260, %v329, %v322
        %v332 = vsel %vm265, %v323, %v328
        %v333 = vsel %vm266, %v322, %v329
        %v336 = vrot.slane %v330, 4
        %v337 = vrot.slane %v331, 4
        %340 = vst [vmem:[#allocation2] sm:$0xf0] %v336
        %341 = vst [vmem:[#allocation2 + $0x8] sm:$0xf0] %v337
        %342 = vst [vmem:[#allocation2 + $0x20] sm:$0xf] %v267
        %343 = vst [vmem:[#allocation2 + $0x28] sm:$0xf] %v269
        %v346 = vrot.slane %v332, 4
        %v347 = vrot.slane %v333, 4
        %350 = vst [vmem:[#allocation2 + $0x30] sm:$0xf0] %v346
        %351 = vst [vmem:[#allocation2 + $0x38] sm:$0xf0] %v347
        %352 = vrot.lane.b32.xlu0 %v287, 16
        %v353 = vpop.permute.xlu0 %352
        %354 = vrot.lane.b32.xlu0 %v288, 16
        %v355 = vpop.permute.xlu0 %354
        %v356 = vsel %vm255, %v353, %v355
        %v357 = vsel %vm255, %v355, %v353
        %358 = vrot.lane.b32.xlu0 %v287, 112
        %v359 = vpop.permute.xlu0 %358
        %360 = vrot.lane.b32.xlu0 %v288, 112
        %v361 = vpop.permute.xlu0 %360
        %v362 = vsel %vm299, %v359, %v361
        %v363 = vsel %vm299, %v361, %v359
        %v364 = vsel %vm259, %v362, %v357
        %v365 = vsel %vm260, %v363, %v356
        %v366 = vsel %vm265, %v357, %v362
        %v367 = vsel %vm266, %v356, %v363
        %368 = vst [vmem:[#allocation2 + $0x10] sm:$0xf] %v364
        %369 = vst [vmem:[#allocation2 + $0x18] sm:$0xf] %v365
        %v372 = vrot.slane %v287, 4
        %v373 = vrot.slane %v288, 4
        %376 = vst [vmem:[#allocation2 + $0x20] sm:$0xf0] %v372
        %377 = vst [vmem:[#allocation2 + $0x28] sm:$0xf0] %v373
        %378 = vst [vmem:[#allocation2 + $0x40] sm:$0xf] %v366
        %379 = vst [vmem:[#allocation2 + $0x48] sm:$0xf] %v367
        %v380 = vld [vmem:[%s2] sm:$0xf]
        %v381 = vld [vmem:[#allocation2] sm:$0xff]
        %v382 = vld [vmem:[#allocation2 + $0x8] sm:$0xff]
        %v383 = vld [vmem:[#allocation2 + $0x10] sm:$0xff]
        %v384 = vld [vmem:[#allocation2 + $0x18] sm:$0xff]
        %v385 = vld [vmem:[#allocation2 + $0x20] sm:$0xff]
        %v386 = vld [vmem:[#allocation2 + $0x28] sm:$0xff]
        %v387 = vld [vmem:[#allocation2 + $0x30] sm:$0xff]
        %v388 = vld [vmem:[#allocation2 + $0x38] sm:$0xff]
        %v389 = vld [vmem:[#allocation2 + $0x40] sm:$0xf]
        %v390 = vld [vmem:[#allocation2 + $0x48] sm:$0xf]
        %vm391 = vcmask 293888
        %v393 = vsel %vm391, %v380, 0
        %vm395 = vcmask 1043456
        %v397 = vsel %vm395, %v389, 0
        %v400 = vsel %vm395, %v390, 0
        %402 = vmatprep.subr.mxu0 %v382
        %403 = vmatpush1.msra.mxu0 %v381
        %404 = vmatprep.subr.mxu0 %v384
        %405 = vmatpush1.msra.mxu0 %v383
        %406 = vmatprep.subr.mxu0 %v386
        %407 = vmatpush1.msra.mxu0 %v385
        %408 = vmatprep.subr.mxu0 %v388
        %409 = vmatpush1.msra.mxu0 %v387
        %410 = vmatprep.subr.mxu0 %v400
        %411 = vmatpush1.msra.mxu0 %v397
        %412 = vmatprep.subr.mxu0 0.0
        %413 = vmatpush1.msra.mxu0 0.0
        %414 = vmatprep.subr.mxu0 0.0
        %415 = vmatpush1.msra.mxu0 0.0
        %416 = vmatprep.subr.mxu0 0.0
        %417 = vmatpush1.msra.mxu0 0.0
        %418 = vmatprep.subr.mxu0 0.0
        %419 = vmatpush1.msra.mxu0 0.0
        %420 = vmatprep.subr.mxu0 0.0
        %421 = vmatpush1.msra.mxu0 0.0
        %422 = vmatprep.subr.mxu0 0.0
        %423 = vmatpush1.msra.mxu0 0.0
        %424 = vmatprep.subr.mxu0 0.0
        %425 = vmatpush1.msra.mxu0 0.0
        %426 = vmatprep.subr.mxu0 0.0
        %427 = vmatpush1.msra.mxu0 0.0
        %428 = vmatprep.subr.mxu0 0.0
        %429 = vmatpush1.msra.mxu0 0.0
        %430 = vmatprep.subr.mxu0 0.0
        %431 = vmatpush1.msra.mxu0 0.0
        %432 = vmatprep.subr.mxu0 0.0
        %433 = vmatpush1.msra.mxu0 0.0
        %434 = vmatprep.subr.mxu0 0.0
        %435 = vmatpush1.msra.mxu0 0.0
        %436 = vmatprep.subr.mxu0 0.0
        %437 = vmatpush1.msra.mxu0 0.0
        %438 = vmatprep.subr.mxu0 0.0
        %439 = vmatpush1.msra.mxu0 0.0
        %440 = vmatprep.subr.mxu0 0.0
        %441 = vmatpush1.msra.mxu0 0.0
        %442 = vmatprep.subr.mxu0 0.0
        %443 = vmatpush1.msra.mxu0 0.0
        %444 = vmatprep.subr.mxu0 0.0
        %445 = vmatpush1.msra.mxu0 0.0
        %446 = vmatprep.subr.mxu0 0.0
        %447 = vmatpush1.msra.mxu0 0.0
        %448 = vmatprep.subr.mxu0 0.0
        %449 = vmatpush1.msra.mxu0 0.0
        %450 = vmatprep.subr.mxu0 0.0
        %451 = vmatpush1.msra.mxu0 0.0
        %452 = vmatprep.subr.mxu0 0.0
        %453 = vmatpush1.msra.mxu0 0.0
        %454 = vmatprep.subr.mxu0 0.0
        %455 = vmatpush1.msra.mxu0 0.0
        %456 = vmatprep.subr.mxu0 0.0
        %457 = vmatpush1.msra.mxu0 0.0
        %458 = vmatprep.subr.mxu0 0.0
        %459 = vmatpush1.msra.mxu0 0.0
        %460 = vmatprep.subr.mxu0 0.0
        %461 = vmatpush1.msra.mxu0 0.0
        %462 = vmatprep.subr.mxu0 0.0
        %463 = vmatpush1.msra.mxu0 0.0
        %464 = vmatprep.subr.mxu0 0.0
        %465 = vmatpush1.msra.mxu0 0.0
        %466 = vmatprep.mubr.f32.mxu0 0.0
        %467 = vmatmul.mubr.f32.gmra.mrb[0].mxu0 %v393
        %v468 = vpop.f32.mrb[0].mxu0
        %v469 = vadd.f32 0.0, %v468
        %v470 = vpop.f32.mrb[0].mxu0
        %v471 = vadd.f32 0.0, %v470
        %472 = vdwg.mxu0
        %v473 = vsel %vm395, %v469, 0.0
        %v474 = vsel %vm395, %v471, 0.0
        %v475 = vadd.f32 %v473, %v474
        %476 = vadd.xlane.f32.xlu0 %v475
        %v477 = vpop.xlane.xlu0 %476
        %v478 = vrcp.pop 256.0
        %v479 = vmul.f32 %v477, %v478
        %v480 = vsub.f32 %v469, %v479
        %v481 = vsub.f32 %v471, %v479
        %v482 = vmul.f32 %v480, %v480
        %v483 = vmul.f32 %v481, %v481
        %v484 = vsel %vm395, %v482, 0.0
        %v485 = vsel %vm395, %v483, 0.0
        %v486 = vadd.f32 %v484, %v485
        %487 = vadd.xlane.f32.xlu0 %v486
        %v488 = vpop.xlane.xlu0 %487
        %v489 = vmul.f32 %v488, %v478
        %v490 = vadd.f32 %v489, 1e-05
        %v491 = vrsqrt.pop %v490
        %v492 = vmul.f32 %v480, %v491
        %v493 = vmul.f32 %v481, %v491
        %v494 = vmax.f32 %v492, 0.0
        %v495 = vmax.f32 %v493, 0.0
        %496 = vrot.lane.b32.xlu0 %v494, 1
        %v497 = vpop.permute.xlu0 %496
        %498 = vrot.lane.b32.xlu0 %v495, 1
        %v499 = vpop.permute.xlu0 %498
        %v500 = vsel %vm275, %v497, %v499
        %v501 = vsel %vm275, %v499, %v497
        %502 = vrot.lane.b32.xlu0 %v494, 127
        %v503 = vpop.permute.xlu0 %502
        %504 = vrot.lane.b32.xlu0 %v495, 127
        %v505 = vpop.permute.xlu0 %504
        %v506 = vsel %vm282, %v503, %v505
        %v507 = vsel %vm282, %v505, %v503
        %v508 = vsel %vm241, %v506, %v501
        %v509 = vsel %vm242, %v507, %v500
        %v510 = vsel %vm253, %v501, %v506
        %v511 = vsel %vm254, %v500, %v507
        %512 = vrot.lane.b32.xlu0 %v508, 16
        %v513 = vpop.permute.xlu0 %512
        %514 = vrot.lane.b32.xlu0 %v509, 16
        %v515 = vpop.permute.xlu0 %514
        %v516 = vsel %vm255, %v513, %v515
        %v517 = vsel %vm255, %v515, %v513
        %518 = vrot.lane.b32.xlu0 %v508, 112
        %v519 = vpop.permute.xlu0 %518
        %520 = vrot.lane.b32.xlu0 %v509, 112
        %v521 = vpop.permute.xlu0 %520
        %v522 = vsel %vm299, %v519, %v521
        %v523 = vsel %vm299, %v521, %v519
        %v524 = vsel %vm259, %v522, %v517
        %v525 = vsel %vm260, %v523, %v516
        %v526 = vsel %vm265, %v517, %v522
        %v527 = vsel %vm266, %v516, %v523
        %528 = vst [vmem:[#allocation2] sm:$0xf] %v524
        %529 = vst [vmem:[#allocation2 + $0x8] sm:$0xf] %v525
        %v532 = vrot.slane %v508, 4
        %v533 = vrot.slane %v509, 4
        %536 = vst [vmem:[#allocation2 + $0x10] sm:$0xf0] %v532
        %537 = vst [vmem:[#allocation2 + $0x18] sm:$0xf0] %v533
        %538 = vst [vmem:[#allocation2 + $0x30] sm:$0xf] %v526
        %539 = vst [vmem:[#allocation2 + $0x38] sm:$0xf] %v527
        %540 = vrot.lane.b32.xlu0 %v494, 16
        %v541 = vpop.permute.xlu0 %540
        %542 = vrot.lane.b32.xlu0 %v495, 16
        %v543 = vpop.permute.xlu0 %542
        %v544 = vsel %vm255, %v541, %v543
        %v545 = vsel %vm255, %v543, %v541
        %546 = vrot.lane.b32.xlu0 %v494, 112
        %v547 = vpop.permute.xlu0 %546
        %548 = vrot.lane.b32.xlu0 %v495, 112
        %v549 = vpop.permute.xlu0 %548
        %v550 = vsel %vm299, %v547, %v549
        %v551 = vsel %vm299, %v549, %v547
        %v552 = vsel %vm259, %v550, %v545
        %v553 = vsel %vm260, %v551, %v544
        %v554 = vsel %vm265, %v545, %v550
        %v555 = vsel %vm266, %v544, %v551
        %v558 = vrot.slane %v552, 4
        %v559 = vrot.slane %v553, 4
        %562 = vst [vmem:[#allocation2] sm:$0xf0] %v558
        %563 = vst [vmem:[#allocation2 + $0x8] sm:$0xf0] %v559
        %564 = vst [vmem:[#allocation2 + $0x20] sm:$0xf] %v494
        %565 = vst [vmem:[#allocation2 + $0x28] sm:$0xf] %v495
        %v568 = vrot.slane %v554, 4
        %v569 = vrot.slane %v555, 4
        %572 = vst [vmem:[#allocation2 + $0x30] sm:$0xf0] %v568
        %573 = vst [vmem:[#allocation2 + $0x38] sm:$0xf0] %v569
        %574 = vrot.lane.b32.xlu0 %v510, 16
        %v575 = vpop.permute.xlu0 %574
        %576 = vrot.lane.b32.xlu0 %v511, 16
        %v577 = vpop.permute.xlu0 %576
        %v578 = vsel %vm255, %v575, %v577
        %v579 = vsel %vm255, %v577, %v575
        %580 = vrot.lane.b32.xlu0 %v510, 112
        %v581 = vpop.permute.xlu0 %580
        %582 = vrot.lane.b32.xlu0 %v511, 112
        %v583 = vpop.permute.xlu0 %582
        %v584 = vsel %vm299, %v581, %v583
        %v585 = vsel %vm299, %v583, %v581
        %v586 = vsel %vm259, %v584, %v579
        %v587 = vsel %vm260, %v585, %v578
        %v588 = vsel %vm265, %v579, %v584
        %v589 = vsel %vm266, %v578, %v585
        %590 = vst [vmem:[#allocation2 + $0x10] sm:$0xf] %v586
        %591 = vst [vmem:[#allocation2 + $0x18] sm:$0xf] %v587
        %v594 = vrot.slane %v510, 4
        %v595 = vrot.slane %v511, 4
        %598 = vst [vmem:[#allocation2 + $0x20] sm:$0xf0] %v594
        %599 = vst [vmem:[#allocation2 + $0x28] sm:$0xf0] %v595
        %600 = vst [vmem:[#allocation2 + $0x40] sm:$0xf] %v588
        %601 = vst [vmem:[#allocation2 + $0x48] sm:$0xf] %v589
        %v602 = vld [vmem:[%s3] sm:$0xf]
        %v603 = vld [vmem:[#allocation2] sm:$0xff]
        %v604 = vld [vmem:[#allocation2 + $0x8] sm:$0xff]
        %v605 = vld [vmem:[#allocation2 + $0x10] sm:$0xff]
        %v606 = vld [vmem:[#allocation2 + $0x18] sm:$0xff]
        %v607 = vld [vmem:[#allocation2 + $0x20] sm:$0xff]
        %v608 = vld [vmem:[#allocation2 + $0x28] sm:$0xff]
        %v609 = vld [vmem:[#allocation2 + $0x30] sm:$0xff]
        %v610 = vld [vmem:[#allocation2 + $0x38] sm:$0xff]
        %v611 = vld [vmem:[#allocation2 + $0x40] sm:$0xf]
        %v612 = vld [vmem:[#allocation2 + $0x48] sm:$0xf]
        %v614 = vsel %vm391, %v602, 0
        %v617 = vsel %vm395, %v611, 0
        %v620 = vsel %vm395, %v612, 0
        %622 = vmatprep.subr.mxu0 %v604
        %623 = vmatpush1.msra.mxu0 %v603
        %624 = vmatprep.subr.mxu0 %v606
        %625 = vmatpush1.msra.mxu0 %v605
        %626 = vmatprep.subr.mxu0 %v608
        %627 = vmatpush1.msra.mxu0 %v607
        %628 = vmatprep.subr.mxu0 %v610
        %629 = vmatpush1.msra.mxu0 %v609
        %630 = vmatprep.subr.mxu0 %v620
        %631 = vmatpush1.msra.mxu0 %v617
        %632 = vmatprep.subr.mxu0 0.0
        %633 = vmatpush1.msra.mxu0 0.0
        %634 = vmatprep.subr.mxu0 0.0
        %635 = vmatpush1.msra.mxu0 0.0
        %636 = vmatprep.subr.mxu0 0.0
        %637 = vmatpush1.msra.mxu0 0.0
        %638 = vmatprep.subr.mxu0 0.0
        %639 = vmatpush1.msra.mxu0 0.0
        %640 = vmatprep.subr.mxu0 0.0
        %641 = vmatpush1.msra.mxu0 0.0
        %642 = vmatprep.subr.mxu0 0.0
        %643 = vmatpush1.msra.mxu0 0.0
        %644 = vmatprep.subr.mxu0 0.0
        %645 = vmatpush1.msra.mxu0 0.0
        %646 = vmatprep.subr.mxu0 0.0
        %647 = vmatpush1.msra.mxu0 0.0
        %648 = vmatprep.subr.mxu0 0.0
        %649 = vmatpush1.msra.mxu0 0.0
        %650 = vmatprep.subr.mxu0 0.0
        %651 = vmatpush1.msra.mxu0 0.0
        %652 = vmatprep.subr.mxu0 0.0
        %653 = vmatpush1.msra.mxu0 0.0
        %654 = vmatprep.subr.mxu0 0.0
        %655 = vmatpush1.msra.mxu0 0.0
        %656 = vmatprep.subr.mxu0 0.0
        %657 = vmatpush1.msra.mxu0 0.0
        %658 = vmatprep.subr.mxu0 0.0
        %659 = vmatpush1.msra.mxu0 0.0
        %660 = vmatprep.subr.mxu0 0.0
        %661 = vmatpush1.msra.mxu0 0.0
        %662 = vmatprep.subr.mxu0 0.0
        %663 = vmatpush1.msra.mxu0 0.0
        %664 = vmatprep.subr.mxu0 0.0
        %665 = vmatpush1.msra.mxu0 0.0
        %666 = vmatprep.subr.mxu0 0.0
        %667 = vmatpush1.msra.mxu0 0.0
        %668 = vmatprep.subr.mxu0 0.0
        %669 = vmatpush1.msra.mxu0 0.0
        %670 = vmatprep.subr.mxu0 0.0
        %671 = vmatpush1.msra.mxu0 0.0
        %672 = vmatprep.subr.mxu0 0.0
        %673 = vmatpush1.msra.mxu0 0.0
        %674 = vmatprep.subr.mxu0 0.0
        %675 = vmatpush1.msra.mxu0 0.0
        %676 = vmatprep.subr.mxu0 0.0
        %677 = vmatpush1.msra.mxu0 0.0
        %678 = vmatprep.subr.mxu0 0.0
        %679 = vmatpush1.msra.mxu0 0.0
        %680 = vmatprep.subr.mxu0 0.0
        %681 = vmatpush1.msra.mxu0 0.0
        %682 = vmatprep.subr.mxu0 0.0
        %683 = vmatpush1.msra.mxu0 0.0
        %684 = vmatprep.subr.mxu0 0.0
        %685 = vmatpush1.msra.mxu0 0.0
        %686 = vmatprep.mubr.f32.mxu0 0.0
        %687 = vmatmul.mubr.f32.gmra.mrb[0].mxu0 %v614
        %v688 = vpop.f32.mrb[0].mxu0
        %v689 = vadd.f32 0.0, %v688
        %v690 = vpop.f32.mrb[0].mxu0
        %v691 = vadd.f32 0.0, %v690
        %692 = vdwg.mxu0
        %v693 = vsel %vm395, %v689, 0.0
        %v694 = vsel %vm395, %v691, 0.0
        %v695 = vadd.f32 %v693, %v694
        %696 = vadd.xlane.f32.xlu0 %v695
        %v697 = vpop.xlane.xlu0 %696
        %v698 = vmul.f32 %v697, %v478
        %v699 = vsub.f32 %v689, %v698
        %v700 = vsub.f32 %v691, %v698
        %v701 = vmul.f32 %v699, %v699
        %v702 = vmul.f32 %v700, %v700
        %v703 = vsel %vm395, %v701, 0.0
        %v704 = vsel %vm395, %v702, 0.0
        %v705 = vadd.f32 %v703, %v704
        %706 = vadd.xlane.f32.xlu0 %v705
        %v707 = vpop.xlane.xlu0 %706
        %v708 = vmul.f32 %v707, %v478
        %v709 = vadd.f32 %v708, 1e-05
        %v710 = vrsqrt.pop %v709
        %v711 = vmul.f32 %v699, %v710
        %v712 = vmul.f32 %v700, %v710
        %v713 = vld [vmem:[%s202] sm:$0xff]
        %v716 = vcombine.low %v711, %v712
        %v718 = vadd.f32 %v713, %v716
        %719 = vst [vmem:[%s226] sm:$0xff] %v718
        %s720 = sand.u32 %s119, 1
        %s721 = scalar_lea.sflag [#allocation5], %s720
        %s722 = sand.u32 %s119, 1
        %s723 = smul.addr %s722, 8
        %s724 = scalar_lea.vmem [#allocation8], %s723
        // Predicated region
        $region45: #{tpu_custom_call.1} parent=35 // pred_check
          %p725 = pneg %p129
        $region46: #{tpu_custom_call.1} parent=35 // pred_check_branch
          %727 = sbr.rel (%p725) target = $region48
        $region47: #{tpu_custom_call.1} parent=35 // pred_region
          %s729 = ssub.s32 128, 128
          %730 = vsyncadd %s721, %s729
          %s731 = smul.addr %s22, 2
          %s732 = smul.addr %s731, 64
          %s733 = scalar_lea.hbm %s4, %s732
          %s735 = sshll.u32 %s724, 4
          %s736 = int_to_ptr.vmem [resolvable:$true] %s735
          %738 = dma.vmem_to_hbm [thread:$0]  %s736, 128, %s733, %s721
        $region48: #{tpu_custom_call.1} parent=35 // pred_fallthru
          _
      $region36: #{tpu_custom_call.1} parent=5 // pred_fallthru
        _
      %p739 = scmp.le.s32.totalorder 2, %s17
      // Predicated region
      $region49: #{tpu_custom_call.1} parent=5 // pred_check
        %p740 = pneg %p739
      $region50: #{tpu_custom_call.1} parent=5 // pred_check_branch
        %742 = sbr.rel (%p740) target = $region52
      $region51: #{tpu_custom_call.1} parent=5 // pred_region
        %s743 = ssub.s32 %s17, 2
        // Predicated region
        $region53: #{tpu_custom_call.1} parent=51 // pred_check
          %p744 = pneg %p135
        $region54: #{tpu_custom_call.1} parent=51 // pred_check_branch
          %746 = sbr.rel (%p744) target = $region56
        $region55: #{tpu_custom_call.1} parent=51 // pred_region
          %s747 = sand.u32 %s120, 1
          %s748 = scalar_lea.sflag [#allocation5], %s747
          %s749 = sand.u32 %s120, 1
          %s750 = smul.addr %s749, 8
          %s751 = scalar_lea.vmem [#allocation8], %s750
          %752 = dma.done %s748, 128
        $region56: #{tpu_custom_call.1} parent=51 // pred_fallthru
          _
      $region52: #{tpu_custom_call.1} parent=5 // pred_fallthru
        _
    $region6: #{tpu_custom_call.1} parent=1 // loop_footer
      %s21 = sadd.s32 1, %s17
    $region7: #{tpu_custom_call.1} parent=1 // loop_footer_branch
      %16 = sbr.rel target = $region3
    $region8: #{tpu_custom_call.1} parent=1 // loop_exit
      _
    %753 = vsyncpa [#allocation4], 1
    %s754 = scalar_lea.sflag [#allocation4], 1
    %755 = vsyncpa %s754, 1
    %756 = vsyncpa [#allocation7], 1
    %s757 = scalar_lea.sflag [#allocation7], 1
    %758 = vsyncpa %s757, 1
    %759 = vsyncpa [#allocation5], 1
    %s760 = scalar_lea.sflag [#allocation5], 1
    %761 = vsyncpa %s760, 1

</llo_original>
